<compile_context>
chip_gen: v7x
topology: tpu7x:2x2x1
jax: 0.10.0
libtpu: 0.0.40
codegen_flags: <defaults>
</compile_context>

<pallas_src>
import functools

import jax
import jax.numpy as jnp
from jax.experimental import pallas as pl
from jax.experimental.pallas import tpu as pltpu

SMOOTH = 1e-6


def _cdiv(a, b):
    return (a + b - 1) // b


def _vmem_limit_bytes():
    """Scoped-VMEM budget derived from the chip's physical VMEM (v7x: 64 MiB)."""
    cap = 64 * 1024 * 1024  # conservative fallback: valid on every generation
    try:
        info = pltpu.get_tpu_info()
        v = getattr(info, "vmem_capacity_bytes", None)
        if v:
            cap = int(v)
    except Exception:
        pass
    return int(min(cap * 3 // 4, 96 * 1024 * 1024))


def _pick_tile(P, bytes_per_pixel, vmem_limit, tile_pixels=None):
    """Byte-aware pixel-tile size (multiple of 128, never larger than the array)."""
    if P <= 128:
        return P                                  # single full block (block == full dim)
    max_tile = (P // 128) * 128                   # keep block <= array dim
    if tile_pixels is not None:
        return max(128, min((int(tile_pixels) // 128) * 128, max_tile))
    # <= ~8 MiB of (logits + targets) per block; double-buffered inputs then
    # occupy <= ~1/3 of the scoped VMEM limit.
    budget = max(256 * 1024, min(8 * 1024 * 1024, vmem_limit // 6))
    tile = (budget // bytes_per_pixel // 128) * 128
    return max(128, min(tile, max_tile))


def _mixed_loss_kernel(logits_ref, targets_ref, weights_ref,
                       ce_ref, inter_ref, union_ref, *,
                       num_classes, tiles_per_core, tile, total_pixels,
                       use_weights):
    """Accumulate one pixel-tile into this core's partial sums.

    logits_ref : (N, C, T) native dtype -- classes on sublanes, pixels on lanes
    targets_ref: (N, 1, T) int32
    weights_ref: (1, C, 1) f32           -- only read when use_weights
    ce_ref     : (1, 1, 1) f32 out       -- this core's weighted-CE sum
    inter_ref  : (1, N, C) f32 out       -- this core's dice intersections
    union_ref  : (1, N, C) f32 out       -- this core's dice unions
    """
    C = num_classes
    t_step = pl.program_id(1)

    @pl.when(t_step == 0)
    def _init():
        ce_ref[...] = jnp.zeros_like(ce_ref)
        inter_ref[...] = jnp.zeros_like(inter_ref)
        union_ref[...] = jnp.zeros_like(union_ref)

    x = logits_ref[...]                            # (N, C, T), native dtype
    tgt = targets_ref[...]                         # (N, 1, T), int32
    n, _, T = x.shape

    # Global pixel index of every lane in this tile.  Masks (a) the ragged last
    # tile and (b) any fully out-of-range tile from the clamped core-split
    # index map.  No HBM padding copy needed.
    base = (pl.program_id(0) * tiles_per_core + t_step) * tile
    lane = jax.lax.broadcasted_iota(jnp.int32, (1, 1, T), 2)
    valid = (base + lane) < total_pixels           # (1, 1, T) bool

    cls_iota = jax.lax.broadcasted_iota(jnp.int32, x.shape, 1)
    # target one-hot; `& valid` kills garbage targets in masked lanes.
    t_oh = ((cls_iota == tgt) & valid).astype(jnp.float32)        # (N, C, T)

    # ---- weighted cross-entropy partial sum: (lse - logit[target]) * w[target]
    # max / argmax in native dtype (bf16 stays bf16 on v6e/v7x); lse in f32.
    m_nat = jnp.max(x, axis=1, keepdims=True)                      # (N, 1, T)
    xf = x.astype(jnp.float32)
    mf = m_nat.astype(jnp.float32)
    lse = jnp.log(jnp.sum(jnp.exp(xf - mf), axis=1, keepdims=True)) + mf
    logit_t = jnp.sum(xf * t_oh, axis=1, keepdims=True)            # (N, 1, T)
    ce_terms = lse - logit_t
    if use_weights:
        w = weights_ref[...].astype(jnp.float32)                   # (1, C, 1)
        w_t = jnp.sum(w * t_oh, axis=1, keepdims=True)             # (N, 1, T)
        ce_terms = ce_terms * w_t
    # final select zeroes masked lanes, so garbage logits (inf/NaN after exp)
    # in the ragged tail can never reach the accumulator.
    ce = jnp.where(valid, ce_terms, 0.0)
    # TODO(synk): single-f32 accumulation drifts ~ulp*N*H*W vs one global mean;
    # switch to per-lane partials if tighter agreement is ever needed.
    ce_ref[...] += jnp.sum(ce)

    # ---- dice partial sums over the C real classes
    # argmax(softmax(x)) == argmax(x); ties resolve to the lowest class index,
    # matching torch.argmax.
    pred = jnp.min(jnp.where(x == m_nat, cls_iota, C), axis=1, keepdims=True)
    pred_oh = ((cls_iota == pred) & valid).astype(jnp.float32)     # (N, C, T)
    # fused lane reductions: one reduce for the union, inter = pred_oh * t_oh.
    # NOTE: exact while per-(n, c) pixel counts stay below 2^24 (f32).
    inter_ref[...] += jnp.sum(pred_oh * t_oh, axis=2).reshape(1, n, C)
    union_ref[...] += jnp.sum(pred_oh + t_oh, axis=2).reshape(1, n, C)


def mixed_loss(outputs, targets, weights=None, alpha=0.5, use_weights=True,
               tile_pixels=None):
    """Pallas implementation of MixedLoss.forward.

    outputs: (N, C, H, W) float logits (f32 or bf16; bf16 stays bf16 in HBM and
             through the dice/argmax math -- only the CE lse path is f32).
    targets: (N, H, W)    integer class labels in [0, C).
    weights: (C,)         per-class CE weights, or None.
    """
    N, C, H, W = outputs.shape
    P = H * W
    NC = H  # reference quirk: one_hot num_classes taken AFTER the argmax -> H
    assert C <= NC, "reference dice_loss requires C <= H"

    logits = outputs.reshape(N, C, P)              # pixels lane-dense
    # TODO(synk): targets could ship as int16/int8 to shave HBM traffic for
    # small C; int32 kept for guaranteed-clean lowering of the (N,1,P) block.
    tgt = targets.reshape(N, 1, P).astype(jnp.int32)

    uw = bool(use_weights) and (weights is not None)
    if uw:
        w = weights.astype(jnp.float32).reshape(1, C, 1)
    else:
        w = jnp.ones((1, C, 1), jnp.float32)       # unused by the kernel

    # ---- byte-aware tile sizing ----
    dsize = jnp.dtype(logits.dtype).itemsize
    bytes_per_pixel = N * C * dsize + N * 4        # logits + int32 targets
    vmem_limit = _vmem_limit_bytes()
    tile = _pick_tile(P, bytes_per_pixel, vmem_limit, tile_pixels)
    # TODO(synk): if N*C*128*dsize alone exceeds the VMEM budget the class axis
    # would need its own (two-pass lse) tiling; not implemented here.

    tiles_total = _cdiv(P, tile)
    # 2-way split of the pixel-tile range across TensorCores (v7x); on 1-TC
    # chips the extra "parallel" axis serializes with the same total step count.
    num_splits = 2 if tiles_total >= 2 else 1
    tiles_per_core = _cdiv(tiles_total, num_splits)

    def _pixel_map(c, t):
        # clamp: at most (num_splits-1) overhanging grid steps re-read a valid
        # tile; the kernel masks them out via the global pixel index.
        return (0, 0, jnp.minimum(c * tiles_per_core + t, tiles_total - 1))

    kernel = functools.partial(
        _mixed_loss_kernel, num_classes=C, tiles_per_core=tiles_per_core,
        tile=tile, total_pixels=P, use_weights=uw)

    ce_p, inter_p, union_p = pl.pallas_call(
        kernel,
        out_shape=(
            jax.ShapeDtypeStruct((num_splits, 1, 1), jnp.float32),
            jax.ShapeDtypeStruct((num_splits, N, C), jnp.float32),
            jax.ShapeDtypeStruct((num_splits, N, C), jnp.float32),
        ),
        grid_spec=pltpu.PrefetchScalarGridSpec(
            num_scalar_prefetch=0,
            grid=(num_splits, tiles_per_core),
            in_specs=[
                pl.BlockSpec((N, C, tile), _pixel_map),
                pl.BlockSpec((N, 1, tile), _pixel_map),
                pl.BlockSpec((1, C, 1), lambda c, t: (0, 0, 0)),
            ],
            out_specs=[
                pl.BlockSpec((1, 1, 1), lambda c, t: (c, 0, 0)),
                pl.BlockSpec((1, N, C), lambda c, t: (c, 0, 0)),
                pl.BlockSpec((1, N, C), lambda c, t: (c, 0, 0)),
            ],
        ),
        compiler_params=pltpu.CompilerParams(
            dimension_semantics=("parallel", "arbitrary"),
            vmem_limit_bytes=vmem_limit),
    )(logits, tgt, w)

    # ---- tiny combine / finalize epilogue (operates on (num_splits, N, C)) ----
    ce_loss = jnp.sum(ce_p) / float(N * P)
    inter = jnp.sum(inter_p, axis=0)               # (N, C)
    union = jnp.sum(union_p, axis=0)               # (N, C)
    dice = (2.0 * inter + SMOOTH) / (union + SMOOTH)
    # classes c in [C, NC) never occur in pred or target -> dice == 1 exactly.
    dice_sum = jnp.sum(dice) + float(N * (NC - C))
    dc_loss = 1.0 - dice_sum / float(N * NC)
    return alpha * ce_loss + (1.0 - alpha) * dc_loss


def mixed_loss_reference(outputs, targets, weights, alpha=0.5):
    """Pure-JAX transcription of the PyTorch module (for verification)."""
    N, C, H, W = outputs.shape
    logp = jax.nn.log_softmax(outputs.astype(jnp.float32), axis=1)
    ce = -jnp.take_along_axis(logp, targets[:, None, :, :], axis=1)[:, 0]   # (N,H,W)
    ce = ce * weights[targets]
    ce_loss = jnp.mean(ce)

    pred = jnp.argmax(jax.nn.softmax(outputs, axis=1), axis=1)              # (N,H,W)
    NC = pred.shape[1]                                                      # == H (quirk)
    pred_oh = jnp.transpose(jax.nn.one_hot(pred, NC, axis=-1), (0, 3, 1, 2))
    targ_oh = jnp.transpose(jax.nn.one_hot(targets, NC, axis=-1), (0, 3, 1, 2))
    inter = jnp.sum(pred_oh * targ_oh, axis=(2, 3))
    union = jnp.sum(pred_oh, axis=(2, 3)) + jnp.sum(targ_oh, axis=(2, 3))
    dice = jnp.mean((2.0 * inter + SMOOTH) / (union + SMOOTH), axis=1)
    dc_loss = 1.0 - jnp.mean(dice)
    return alpha * ce_loss + (1.0 - alpha) * dc_loss


if __name__ == "__main__":
    key = jax.random.PRNGKey(0)
    k1, k2, k3, k4, k5, k6 = jax.random.split(key, 6)

    N, C, H, W = 2, 4, 16, 16
    outputs = jax.random.normal(k1, (N, C, H, W), dtype=jnp.float32)
    targets = jax.random.randint(k2, (N, H, W), 0, C, dtype=jnp.int32)
    weights = jnp.array([0.5, 1.0, 1.5, 2.0], dtype=jnp.float32)

    # 1) weighted, byte-aware auto tile (single full block)
    loss = jax.block_until_ready(mixed_loss(outputs, targets, weights))
    ref = jax.block_until_ready(mixed_loss_reference(outputs, targets, weights))
    assert jnp.allclose(loss, ref, rtol=1e-4, atol=1e-4), (loss, ref)

    # 2) larger spatial + forced small tile -> multi-tile accumulation per core
    #    and the 2-way core split (grid (2, 2))
    H2, W2 = 32, 16
    outputs2 = jax.random.normal(k3, (N, C, H2, W2), dtype=jnp.float32)
    targets2 = jax.random.randint(k4, (N, H2, W2), 0, C, dtype=jnp.int32)
    loss2 = jax.block_until_ready(
        mixed_loss(outputs2, targets2, weights, tile_pixels=128))
    ref2 = jax.block_until_ready(mixed_loss_reference(outputs2, targets2, weights))
    assert jnp.allclose(loss2, ref2, rtol=1e-4, atol=1e-4), (loss2, ref2)

    # 3) ragged pixel count (H*W not a tile multiple) + unweighted CE path
    H3, W3 = 16, 12   # P = 192
    outputs3 = jax.random.normal(k5, (N, C, H3, W3), dtype=jnp.float32)
    targets3 = jax.random.randint(k6, (N, H3, W3), 0, C, dtype=jnp.int32)
    loss3 = jax.block_until_ready(
        mixed_loss(outputs3, targets3, None, use_weights=False, tile_pixels=128))
    ref3 = jax.block_until_ready(
        mixed_loss_reference(outputs3, targets3, jnp.ones((C,), jnp.float32)))
    assert jnp.allclose(loss3, ref3, rtol=1e-4, atol=1e-4), (loss3, ref3)

    # 4) bf16 logits exercise the native-dtype dice/argmax path
    loss4 = jax.block_until_ready(
        mixed_loss(outputs.astype(jnp.bfloat16), targets, weights, tile_pixels=128))
    ref4 = jax.block_until_ready(
        mixed_loss_reference(outputs.astype(jnp.bfloat16).astype(jnp.float32),
                             targets, weights))
    assert jnp.allclose(loss4, ref4, rtol=1e-3, atol=1e-3), (loss4, ref4)

    print("KERNEL_OK")
</pallas_src>

<mosaic_0001>
module attributes {stable_mosaic.version = 11 : i64} {
  func.func @_mixed_loss_kernel(%arg0: i32, %arg1: i32, %arg2: memref<2x4x256xf32, #tpu.memory_space<vmem>>, %arg3: memref<2x1x256xi32, #tpu.memory_space<vmem>>, %arg4: memref<1x4x1xf32, #tpu.memory_space<vmem>>, %arg5: memref<1x1x1xf32, #tpu.memory_space<vmem>>, %arg6: memref<1x2x4xf32, #tpu.memory_space<vmem>>, %arg7: memref<1x2x4xf32, #tpu.memory_space<vmem>>) attributes {dimension_semantics = [#tpu.dimension_semantics<parallel>, #tpu.dimension_semantics<arbitrary>], iteration_bounds = array<i64: 1, 1>, scalar_prefetch = 0 : i64, scratch_operands = 0 : i64, tpu.core_type = #tpu.core_type<tc>, window_params = [{transform_indices = @transform_0, window_bounds = array<i64: 2, 4, 256>}, {transform_indices = @transform_1, window_bounds = array<i64: 2, 1, 256>}, {pipeline_mode = #tpu.pipeline_mode<synchronous>, transform_indices = @transform_2, window_bounds = array<i64: 1, 4, 1>}, {transform_indices = @transform_3, window_bounds = array<i64: 1, 1, 1>}, {transform_indices = @transform_4, window_bounds = array<i64: 1, 2, 4>}, {transform_indices = @transform_5, window_bounds = array<i64: 1, 2, 4>}]} {
    %c0_i32 = arith.constant 0 : i32
    %0 = arith.cmpi eq, %arg1, %c0_i32 : i32
    %1 = arith.extui %0 : i1 to i32
    %c0_i32_0 = arith.constant 0 : i32
    %2 = arith.cmpi ne, %1, %c0_i32_0 : i32
    scf.if %2 {
      %cst_36 = arith.constant 0.000000e+00 : f32
      %75 = vector.broadcast %cst_36 : f32 to vector<1x1x1xf32>
      %c0_37 = arith.constant 0 : index
      %c0_38 = arith.constant 0 : index
      %c0_39 = arith.constant 0 : index
      %76 = vector.load %arg5[%c0_37, %c0_38, %c0_39] : memref<1x1x1xf32, #tpu.memory_space<vmem>>, vector<1x1x1xf32>
      tpu.vector_store %arg5[%c0_37, %c0_38, %c0_39], %75 {strides = array<i32>} : memref<1x1x1xf32, #tpu.memory_space<vmem>>, vector<1x1x1xf32>,
      %cst_40 = arith.constant 0.000000e+00 : f32
      %77 = vector.broadcast %cst_40 : f32 to vector<1x2x4xf32>
      %c0_41 = arith.constant 0 : index
      %c0_42 = arith.constant 0 : index
      %c0_43 = arith.constant 0 : index
      %78 = vector.load %arg6[%c0_41, %c0_42, %c0_43] : memref<1x2x4xf32, #tpu.memory_space<vmem>>, vector<1x2x4xf32>
      tpu.vector_store %arg6[%c0_41, %c0_42, %c0_43], %77 {strides = array<i32>} : memref<1x2x4xf32, #tpu.memory_space<vmem>>, vector<1x2x4xf32>,
      %cst_44 = arith.constant 0.000000e+00 : f32
      %79 = vector.broadcast %cst_44 : f32 to vector<1x2x4xf32>
      %c0_45 = arith.constant 0 : index
      %c0_46 = arith.constant 0 : index
      %c0_47 = arith.constant 0 : index
      %80 = vector.load %arg7[%c0_45, %c0_46, %c0_47] : memref<1x2x4xf32, #tpu.memory_space<vmem>>, vector<1x2x4xf32>
      tpu.vector_store %arg7[%c0_45, %c0_46, %c0_47], %79 {strides = array<i32>} : memref<1x2x4xf32, #tpu.memory_space<vmem>>, vector<1x2x4xf32>,
    } else {
    }
    %c0 = arith.constant 0 : index
    %c0_1 = arith.constant 0 : index
    %c0_2 = arith.constant 0 : index
    %3 = vector.load %arg2[%c0, %c0_1, %c0_2] : memref<2x4x256xf32, #tpu.memory_space<vmem>>, vector<2x4x256xf32>
    %c0_3 = arith.constant 0 : index
    %c0_4 = arith.constant 0 : index
    %c0_5 = arith.constant 0 : index
    %4 = vector.load %arg3[%c0_3, %c0_4, %c0_5] : memref<2x1x256xi32, #tpu.memory_space<vmem>>, vector<2x1x256xi32>
    %c1_i32 = arith.constant 1 : i32
    %5 = arith.muli %arg0, %c1_i32 : i32
    %6 = arith.addi %5, %arg1 : i32
    %c256_i32 = arith.constant 256 : i32
    %7 = arith.muli %6, %c256_i32 : i32
    %8 = tpu.iota {dimensions = array<i32: 2>} : vector<1x1x256xi32>
    %9 = vector.broadcast %7 : i32 to vector<1x1x256xi32>
    %10 = arith.addi %9, %8 : vector<1x1x256xi32>
    %c256_i32_6 = arith.constant 256 : i32
    %11 = vector.broadcast %c256_i32_6 : i32 to vector<1x1x256xi32>
    %12 = arith.cmpi slt, %10, %11 : vector<1x1x256xi32>
    %13 = tpu.iota {dimensions = array<i32: 1>} : vector<2x4x256xi32>
    %14 = vector.broadcast %4 : vector<2x1x256xi32> to vector<2x4x256xi32>
    %15 = arith.cmpi eq, %13, %14 : vector<2x4x256xi32>
    %16 = vector.broadcast %12 : vector<1x1x256xi1> to vector<2x4x256xi1>
    %17 = arith.andi %15, %16 : vector<2x4x256xi1>
    %18 = arith.extui %17 : vector<2x4x256xi1> to vector<2x4x256xi32>
    %19 = arith.sitofp %18 : vector<2x4x256xi32> to vector<2x4x256xf32>
    %cst = arith.constant dense<0xFF800000> : vector<2x256xf32>
    %20 = vector.multi_reduction <maximumf>, %3, %cst [1] : vector<2x4x256xf32> to vector<2x256xf32>
    %21 = vector.shape_cast %20 : vector<2x256xf32> to vector<2x1x256xf32>
    %22 = vector.broadcast %21 : vector<2x1x256xf32> to vector<2x4x256xf32>
    %23 = arith.subf %3, %22 : vector<2x4x256xf32>
    %24 = math.exp %23 : vector<2x4x256xf32>
    %cst_7 = arith.constant dense<0.000000e+00> : vector<2x256xf32>
    %25 = vector.multi_reduction <add>, %24, %cst_7 [1] : vector<2x4x256xf32> to vector<2x256xf32>
    %26 = vector.shape_cast %25 : vector<2x256xf32> to vector<2x1x256xf32>
    %27 = math.log %26 : vector<2x1x256xf32>
    %28 = arith.addf %27, %21 : vector<2x1x256xf32>
    %29 = arith.mulf %3, %19 : vector<2x4x256xf32>
    %cst_8 = arith.constant dense<0.000000e+00> : vector<2x256xf32>
    %30 = vector.multi_reduction <add>, %29, %cst_8 [1] : vector<2x4x256xf32> to vector<2x256xf32>
    %31 = vector.shape_cast %30 : vector<2x256xf32> to vector<2x1x256xf32>
    %32 = arith.subf %28, %31 : vector<2x1x256xf32>
    %c0_9 = arith.constant 0 : index
    %c0_10 = arith.constant 0 : index
    %c0_11 = arith.constant 0 : index
    %33 = vector.load %arg4[%c0_9, %c0_10, %c0_11] : memref<1x4x1xf32, #tpu.memory_space<vmem>>, vector<1x4x1xf32>
    %34 = vector.broadcast %33 : vector<1x4x1xf32> to vector<2x4x256xf32>
    %35 = arith.mulf %34, %19 : vector<2x4x256xf32>
    %cst_12 = arith.constant dense<0.000000e+00> : vector<2x256xf32>
    %36 = vector.multi_reduction <add>, %35, %cst_12 [1] : vector<2x4x256xf32> to vector<2x256xf32>
    %37 = vector.shape_cast %36 : vector<2x256xf32> to vector<2x1x256xf32>
    %38 = arith.mulf %32, %37 : vector<2x1x256xf32>
    %cst_13 = arith.constant 0.000000e+00 : f32
    %39 = vector.shape_cast %12 : vector<1x1x256xi1> to vector<1x1x256xi1>
    %40 = vector.broadcast %39 : vector<1x1x256xi1> to vector<2x1x256xi1>
    %41 = vector.broadcast %cst_13 : f32 to vector<2x1x256xf32>
    %42 = arith.select %40, %38, %41 : vector<2x1x256xi1>, vector<2x1x256xf32>
    %c0_14 = arith.constant 0 : index
    %c0_15 = arith.constant 0 : index
    %c0_16 = arith.constant 0 : index
    %43 = vector.load %arg5[%c0_14, %c0_15, %c0_16] : memref<1x1x1xf32, #tpu.memory_space<vmem>>, vector<1x1x1xf32>
    %44 = vector.shape_cast %42 : vector<2x1x256xf32> to vector<1x2x1x256xf32>
    %cst_17 = arith.constant dense<0.000000e+00> : vector<1xf32>
    %45 = vector.multi_reduction <add>, %44, %cst_17 [1, 2, 3] : vector<1x2x1x256xf32> to vector<1xf32>
    %46 = vector.shape_cast %45 : vector<1xf32> to vector<1x1x1x1xf32>
    %47 = vector.extract %46[0, 0, 0, 0] : f32 from vector<1x1x1x1xf32>
    %48 = vector.broadcast %47 : f32 to vector<1x1x1xf32>
    %49 = arith.addf %43, %48 : vector<1x1x1xf32>
    %c0_18 = arith.constant 0 : index
    %c0_19 = arith.constant 0 : index
    %c0_20 = arith.constant 0 : index
    %50 = vector.load %arg5[%c0_18, %c0_19, %c0_20] : memref<1x1x1xf32, #tpu.memory_space<vmem>>, vector<1x1x1xf32>
    tpu.vector_store %arg5[%c0_18, %c0_19, %c0_20], %49 {strides = array<i32>} : memref<1x1x1xf32, #tpu.memory_space<vmem>>, vector<1x1x1xf32>,
    %51 = vector.broadcast %21 : vector<2x1x256xf32> to vector<2x4x256xf32>
    %52 = arith.cmpf oeq, %3, %51 : vector<2x4x256xf32>
    %c4_i32 = arith.constant 4 : i32
    %53 = vector.broadcast %c4_i32 : i32 to vector<2x4x256xi32>
    %54 = arith.select %52, %13, %53 : vector<2x4x256xi1>, vector<2x4x256xi32>
    %cst_21 = arith.constant dense<2147483647> : vector<2x256xi32>
    %55 = vector.multi_reduction <minsi>, %54, %cst_21 [1] : vector<2x4x256xi32> to vector<2x256xi32>
    %56 = vector.shape_cast %55 : vector<2x256xi32> to vector<2x1x256xi32>
    %57 = vector.broadcast %56 : vector<2x1x256xi32> to vector<2x4x256xi32>
    %58 = arith.cmpi eq, %13, %57 : vector<2x4x256xi32>
    %59 = vector.broadcast %12 : vector<1x1x256xi1> to vector<2x4x256xi1>
    %60 = arith.andi %58, %59 : vector<2x4x256xi1>
    %61 = arith.extui %60 : vector<2x4x256xi1> to vector<2x4x256xi32>
    %62 = arith.sitofp %61 : vector<2x4x256xi32> to vector<2x4x256xf32>
    %c0_22 = arith.constant 0 : index
    %c0_23 = arith.constant 0 : index
    %c0_24 = arith.constant 0 : index
    %63 = vector.load %arg6[%c0_22, %c0_23, %c0_24] : memref<1x2x4xf32, #tpu.memory_space<vmem>>, vector<1x2x4xf32>
    %64 = arith.mulf %62, %19 : vector<2x4x256xf32>
    %cst_25 = arith.constant dense<0.000000e+00> : vector<2x4xf32>
    %65 = vector.multi_reduction <add>, %64, %cst_25 [2] : vector<2x4x256xf32> to vector<2x4xf32>
    %66 = vector.shape_cast %65 : vector<2x4xf32> to vector<1x2x4xf32>
    %67 = arith.addf %63, %66 : vector<1x2x4xf32>
    %c0_26 = arith.constant 0 : index
    %c0_27 = arith.constant 0 : index
    %c0_28 = arith.constant 0 : index
    %68 = vector.load %arg6[%c0_26, %c0_27, %c0_28] : memref<1x2x4xf32, #tpu.memory_space<vmem>>, vector<1x2x4xf32>
    tpu.vector_store %arg6[%c0_26, %c0_27, %c0_28], %67 {strides = array<i32>} : memref<1x2x4xf32, #tpu.memory_space<vmem>>, vector<1x2x4xf32>,
    %c0_29 = arith.constant 0 : index
    %c0_30 = arith.constant 0 : index
    %c0_31 = arith.constant 0 : index
    %69 = vector.load %arg7[%c0_29, %c0_30, %c0_31] : memref<1x2x4xf32, #tpu.memory_space<vmem>>, vector<1x2x4xf32>
    %70 = arith.addf %62, %19 : vector<2x4x256xf32>
    %cst_32 = arith.constant dense<0.000000e+00> : vector<2x4xf32>
    %71 = vector.multi_reduction <add>, %70, %cst_32 [2] : vector<2x4x256xf32> to vector<2x4xf32>
    %72 = vector.shape_cast %71 : vector<2x4xf32> to vector<1x2x4xf32>
    %73 = arith.addf %69, %72 : vector<1x2x4xf32>
    %c0_33 = arith.constant 0 : index
    %c0_34 = arith.constant 0 : index
    %c0_35 = arith.constant 0 : index
    %74 = vector.load %arg7[%c0_33, %c0_34, %c0_35] : memref<1x2x4xf32, #tpu.memory_space<vmem>>, vector<1x2x4xf32>
    tpu.vector_store %arg7[%c0_33, %c0_34, %c0_35], %73 {strides = array<i32>} : memref<1x2x4xf32, #tpu.memory_space<vmem>>, vector<1x2x4xf32>,
    return
  }
  func.func @transform_0(%arg0: i32, %arg1: i32) -> (i32, i32, i32) {
    %c1_i32 = arith.constant 1 : i32
    %0 = arith.muli %arg0, %c1_i32 : i32
    %1 = arith.addi %0, %arg1 : i32
    %c0_i32 = arith.constant 0 : i32
    %2 = arith.minsi %1, %c0_i32 : i32
    %c0_i32_0 = arith.constant 0 : i32
    %c0_i32_1 = arith.constant 0 : i32
    %c0_i32_2 = arith.constant 0 : i32
    return %c0_i32_0, %c0_i32_1, %2 : i32, i32, i32
  }
  func.func @transform_1(%arg0: i32, %arg1: i32) -> (i32, i32, i32) {
    %c1_i32 = arith.constant 1 : i32
    %0 = arith.muli %arg0, %c1_i32 : i32
    %1 = arith.addi %0, %arg1 : i32
    %c0_i32 = arith.constant 0 : i32
    %2 = arith.minsi %1, %c0_i32 : i32
    %c0_i32_0 = arith.constant 0 : i32
    %c0_i32_1 = arith.constant 0 : i32
    %c0_i32_2 = arith.constant 0 : i32
    return %c0_i32_0, %c0_i32_1, %2 : i32, i32, i32
  }
  func.func @transform_2(%arg0: i32, %arg1: i32) -> (i32, i32, i32) {
    %c0_i32 = arith.constant 0 : i32
    %c0_i32_0 = arith.constant 0 : i32
    %c0_i32_1 = arith.constant 0 : i32
    %c0_i32_2 = arith.constant 0 : i32
    return %c0_i32, %c0_i32_0, %c0_i32_1 : i32, i32, i32
  }
  func.func @transform_3(%arg0: i32, %arg1: i32) -> (i32, i32, i32) {
    %c0_i32 = arith.constant 0 : i32
    %c0_i32_0 = arith.constant 0 : i32
    %c0_i32_1 = arith.constant 0 : i32
    return %arg0, %c0_i32, %c0_i32_0 : i32, i32, i32
  }
  func.func @transform_4(%arg0: i32, %arg1: i32) -> (i32, i32, i32) {
    %c0_i32 = arith.constant 0 : i32
    %c0_i32_0 = arith.constant 0 : i32
    %c0_i32_1 = arith.constant 0 : i32
    return %arg0, %c0_i32, %c0_i32_0 : i32, i32, i32
  }
  func.func @transform_5(%arg0: i32, %arg1: i32) -> (i32, i32, i32) {
    %c0_i32 = arith.constant 0 : i32
    %c0_i32_0 = arith.constant 0 : i32
    %c0_i32_1 = arith.constant 0 : i32
    return %arg0, %c0_i32, %c0_i32_0 : i32, i32, i32
  }
}

</mosaic_0001>

<llo_original>
// kernel: tpu_custom_call.1
$region0: #{tpu_custom_call.1}
  #allocation0 [shape = 'u32[]', space=smem, size = 0x4, offset = 0x4, fixed_abs, tag = 'smem constant byte address 0x4 - core index']
  #allocation1 [shape = 'u32[144,128]{1,0:T(1,128)}', space=vmem, size = 0x12000, scoped, tag = 'internal scratch']
  %s0 = inlined_call_operand.hbm [shape: f32[2,4,256], index: 0, kind: input, shape index: {}]
  %s1 = inlined_call_operand.vmem [shape: s32[2,1,256], index: 1, kind: input, shape index: {}]
  %s2 = inlined_call_operand.vmem [shape: f32[1,4,1], index: 2, kind: input, shape index: {}]
  %s3 = inlined_call_operand.hbm [shape: f32[1,1,1], index: 3, kind: output, shape index: {0}]
  %s4 = inlined_call_operand.hbm [shape: f32[1,2,4], index: 4, kind: output, shape index: {1}]
  %s5 = inlined_call_operand.hbm [shape: f32[1,2,4], index: 5, kind: output, shape index: {2}]
  %6 = xla_tuple %s3, %s4, %s5
  %s7 = sld [smem:[#allocation0]]
  $region46: #{tpu_custom_call.1} parent=0
    _
  %s9 = ssub.s32 1, %s7
  %s10 = scalar_select 0, %s9, %s7
  $region1: #{tpu_custom_call.1} parent=0
    #allocation2 [shape = 'u8[8192]{0}', space=vmem, size = 0x2000, scoped, tag = 'input window, operand 0, single buffered']
    #allocation3 [shape = 's32[1]{0}', space=sflag, size = 0x4, scoped, tag = 'scoped memory for tpu_custom_call.1']
    #allocation4 [shape = 's32[1]{0}', space=sflag, size = 0x4, scoped, tag = 'scoped memory for tpu_custom_call.1']
    #allocation5 [shape = 'u8[512]{0}', space=vmem, size = 0x400, scoped, tag = 'output window, operand 0, single buffered']
    #allocation6 [shape = 'u8[1024]{0}', space=vmem, size = 0x400, scoped, tag = 'output window, operand 1, single buffered']
    #allocation7 [shape = 's32[1]{0}', space=sflag, size = 0x4, scoped, tag = 'scoped memory for tpu_custom_call.1']
    #allocation8 [shape = 'u8[1024]{0}', space=vmem, size = 0x400, scoped, tag = 'output window, operand 2, single buffered']
    %11 = vsyncpa [#allocation3], 0
    %12 = vsyncpa [#allocation4], 0
    %13 = vsyncpa [#allocation7], 0
    // Predicated region
    $region2: #{tpu_custom_call.1} parent=1 // pred_check
      _
    $region3: #{tpu_custom_call.1} parent=1 // pred_check_branch
      %15 = sbr.rel (0) target = $region5
    $region4: #{tpu_custom_call.1} parent=1 // pred_region
      %s16 = sadd.s32 0, 0
      %p17 = scmp.lt.s32.totalorder %s16, 0
      %s18 = scalar_select %p17, %s16, 0
      %s19 = smul.u32 2, %s18
      %s21 = ssub.s32 256, 256
      %22 = vsyncadd [#allocation3], %s21
      %s23 = smul.addr %s19, 64
      %s24 = scalar_lea.hbm %s0, %s23
      %s25 = sshll.u32 [#allocation2], 4
      %s26 = int_to_ptr.vmem [resolvable:$true] %s25
      %31 = dma.hbm_to_vmem [thread:$0]  %s24, 256, %s26, [#allocation3], 128, 128, 8
    $region5: #{tpu_custom_call.1} parent=1 // pred_fallthru
      _
    // Predicated region
    $region6: #{tpu_custom_call.1} parent=1 // pred_check
      _
    $region7: #{tpu_custom_call.1} parent=1 // pred_check_branch
      %33 = sbr.rel (0) target = $region9
    $region8: #{tpu_custom_call.1} parent=1 // pred_region
      %s34 = sadd.s32 0, 0
      %p35 = scmp.lt.s32.totalorder %s34, 0
      %s36 = scalar_select %p35, %s34, 0
      %s37 = smul.u32 2, %s36
      %p38 = scmp.lt.s32.totalorder %s37, 1
      %s39 = scalar_select %p38, %s37, 1
      %s40 = scalar_lea.vmem %s1, %s39
      %s41 = sadd.s32 0, 0
      %p42 = scmp.lt.s32.totalorder %s41, 0
      %s43 = scalar_select %p42, %s41, 0
      %s44 = smul.u32 2, %s43
    $region9: #{tpu_custom_call.1} parent=1 // pred_fallthru
      _
    // Predicated region
    $region10: #{tpu_custom_call.1} parent=1 // pred_check
      _
    $region11: #{tpu_custom_call.1} parent=1 // pred_check_branch
      %46 = sbr.rel (0) target = $region13
    $region12: #{tpu_custom_call.1} parent=1 // pred_region
      _
    $region13: #{tpu_custom_call.1} parent=1 // pred_fallthru
      _
    // Predicated region
    $region14: #{tpu_custom_call.1} parent=1 // pred_check
      _
    $region15: #{tpu_custom_call.1} parent=1 // pred_check_branch
      %48 = sbr.rel (0) target = $region17
    $region16: #{tpu_custom_call.1} parent=1 // pred_region
      %49 = dma.done [#allocation3], 256
    $region17: #{tpu_custom_call.1} parent=1 // pred_fallthru
      _
    %s50 = sadd.s32 0, 0
    %p51 = scmp.lt.s32.totalorder %s50, 0
    %s52 = scalar_select %p51, %s50, 0
    %s53 = smul.u32 2, %s52
    %p54 = scmp.lt.s32.totalorder %s53, 1
    %s55 = scalar_select %p54, %s53, 1
    %s56 = scalar_lea.vmem %s1, %s55
    %s57 = sadd.s32 0, 0
    %p58 = scmp.lt.s32.totalorder %s57, 0
    %s59 = scalar_select %p58, %s57, 0
    %s60 = smul.u32 2, %s59
    %s61 = sadd.s32 0, 0
    %p62 = scmp.lt.s32.totalorder %s61, 0
    %s63 = scalar_select %p62, %s61, 0
    %s64 = smul.u32 2, %s63
    %p65 = scmp.lt.s32.totalorder %s64, 1
    %s66 = scalar_select %p65, %s64, 1
    %s67 = scalar_lea.vmem %s1, %s66
    %s68 = sadd.s32 0, 0
    %p69 = scmp.lt.s32.totalorder %s68, 0
    %s70 = scalar_select %p69, %s68, 0
    %s71 = smul.u32 2, %s70
    %p72 = scmp.eq.s32.totalorder 0, 0
    // Predicated region
    $region18: #{tpu_custom_call.1} parent=1 // pred_check
      %p73 = pneg %p72
    $region19: #{tpu_custom_call.1} parent=1 // pred_check_branch
      %75 = sbr.rel (%p73) target = $region21
    $region20: #{tpu_custom_call.1} parent=1 // pred_region
      %vm76 = vcmask 0
      %77 = vst.msk [vmem:[#allocation5] sm:$0x1] %vm76, 0.0
      %vm78 = vcmask 25600
      %79 = vst.msk [vmem:[#allocation6] sm:$0x3] %vm78, 0.0
      %80 = vst.msk [vmem:[#allocation8] sm:$0x3] %vm78, 0.0
    $region21: #{tpu_custom_call.1} parent=1 // pred_fallthru
      _
    %v81 = vld [vmem:[#allocation2] sm:$0xff]
    %v82 = vld [vmem:[#allocation2 + $0x8] sm:$0xff]
    %v83 = vld [vmem:[%s67] sm:$0x3]
    %v84 = vld [vmem:[%s67 + $0x2] sm:$0x3]
    %s85 = sadd.s32 0, 0
    %s86 = smul.u32 %s85, 256
    %v87 = vlaneseq
    %v88 = vand.u32 %v87, 127
    %v89 = vadd.s32 %v88, 128
    %v90 = vstv %s86
    %v91 = vadd.s32 %v90, %v88
    %v92 = vadd.s32 %v90, %v89
    %vm93 = vcmp.lt.s32.totalorder %v91, 256
    %vm94 = vcmp.lt.s32.totalorder %v92, 256
    %v95 = vlaneseq
    %v96 = vshrl.u32 %v95, 7
    %v97 = vlaneseq
    %v98 = vshrl.u32 %v97, 7
    %v99 = vsub.s32 0, %v98
    %v100 = vrot.slane %v83, %v99
    %v101 = vlaneseq
    %v102 = vshrl.u32 %v101, 7
    %v103 = vsub.s32 1, %v102
    %v104 = vrot.slane %v83, %v103
    %v105 = vlaneseq
    %v106 = vshrl.u32 %v105, 7
    %v107 = vsub.s32 0, %v106
    %v108 = vrot.slane %v84, %v107
    %v109 = vlaneseq
    %v110 = vshrl.u32 %v109, 7
    %v111 = vsub.s32 1, %v110
    %v112 = vrot.slane %v84, %v111
    %vm113 = vcmp.eq.s32.totalorder %v96, %v100
    %vm114 = vcmp.eq.s32.totalorder %v96, %v104
    %vm115 = vcmp.eq.s32.totalorder %v96, %v108
    %vm116 = vcmp.eq.s32.totalorder %v96, %v112
    %v117 = vsel %vm93, 1, 0
    %v118 = vsel %vm94, 1, 0
    %vm119 = vcmp.eq.s32.totalorder %v117, 1
    %vm120 = vcmp.eq.s32.totalorder %v118, 1
    %vm121 = vmand %vm113, %vm119
    %vm122 = vmand %vm114, %vm120
    %vm123 = vmand %vm115, %vm119
    %vm124 = vmand %vm116, %vm120
    %v125 = vsel %vm121, 1, 0
    %v126 = vsel %vm122, 1, 0
    %v127 = vsel %vm123, 1, 0
    %v128 = vsel %vm124, 1, 0
    %v129 = vcvt.s32.f32 %v125
    %v130 = vcvt.s32.f32 %v126
    %v131 = vcvt.s32.f32 %v127
    %v132 = vcvt.s32.f32 %v128
    %v135 = vcombine.high %v81, %v81
    %v136 = vcombine.high %v82, %v82
    %vm139 = vcmask 1043456
    %v140 = vsel %vm139, %v81, -inf
    %v141 = vrot.slane %v140, 4
    %v142 = vmax.f32 %v140, %v141
    %v143 = vrot.slane %v142, 2
    %v144 = vmax.f32 %v142, %v143
    %v145 = vrot.slane %v144, 1
    %v146 = vmax.f32 %v144, %v145
    %v147 = vsel %vm139, %v135, -inf
    %v148 = vrot.slane %v147, 4
    %v149 = vmax.f32 %v147, %v148
    %v150 = vrot.slane %v149, 2
    %v151 = vmax.f32 %v149, %v150
    %v152 = vrot.slane %v151, 1
    %v153 = vmax.f32 %v151, %v152
    %v154 = vsel %vm139, %v82, -inf
    %v155 = vrot.slane %v154, 4
    %v156 = vmax.f32 %v154, %v155
    %v157 = vrot.slane %v156, 2
    %v158 = vmax.f32 %v156, %v157
    %v159 = vrot.slane %v158, 1
    %v160 = vmax.f32 %v158, %v159
    %v161 = vsel %vm139, %v136, -inf
    %v162 = vrot.slane %v161, 4
    %v163 = vmax.f32 %v161, %v162
    %v164 = vrot.slane %v163, 2
    %v165 = vmax.f32 %v163, %v164
    %v166 = vrot.slane %v165, 1
    %v167 = vmax.f32 %v165, %v166
    %v172 = vcombine.low %v146, %v153
    %v173 = vcombine.low %v160, %v167
    %v176 = vsub.f32 %v81, %v172
    %v177 = vsub.f32 %v82, %v173
    %v178 = vmul.f32 %v176, 1.442695
    %v179 = vpow.pop %v178
    %v180 = vmul.f32 %v177, 1.442695
    %v181 = vpow.pop %v180
    %v184 = vcombine.high %v179, %v179
    %v185 = vcombine.high %v181, %v181
    %v188 = vsel %vm139, %v179, 0.0
    %v189 = vrot.slane %v188, 4
    %v190 = vadd.f32 %v188, %v189
    %v191 = vrot.slane %v190, 2
    %v192 = vadd.f32 %v190, %v191
    %v193 = vrot.slane %v192, 1
    %v194 = vadd.f32 %v192, %v193
    %v195 = vsel %vm139, %v184, 0.0
    %v196 = vrot.slane %v195, 4
    %v197 = vadd.f32 %v195, %v196
    %v198 = vrot.slane %v197, 2
    %v199 = vadd.f32 %v197, %v198
    %v200 = vrot.slane %v199, 1
    %v201 = vadd.f32 %v199, %v200
    %v202 = vsel %vm139, %v181, 0.0
    %v203 = vrot.slane %v202, 4
    %v204 = vadd.f32 %v202, %v203
    %v205 = vrot.slane %v204, 2
    %v206 = vadd.f32 %v204, %v205
    %v207 = vrot.slane %v206, 1
    %v208 = vadd.f32 %v206, %v207
    %v209 = vsel %vm139, %v185, 0.0
    %v210 = vrot.slane %v209, 4
    %v211 = vadd.f32 %v209, %v210
    %v212 = vrot.slane %v211, 2
    %v213 = vadd.f32 %v211, %v212
    %v214 = vrot.slane %v213, 1
    %v215 = vadd.f32 %v213, %v214
    %v216 = vlog2.pop %v194
    %v217 = vmul.f32 %v216, 0.6931472
    %v218 = vlog2.pop %v201
    %v219 = vmul.f32 %v218, 0.6931472
    %v220 = vlog2.pop %v208
    %v221 = vmul.f32 %v220, 0.6931472
    %v222 = vlog2.pop %v215
    %v223 = vmul.f32 %v222, 0.6931472
    %v224 = vadd.f32 %v217, %v146
    %v225 = vadd.f32 %v219, %v153
    %v226 = vadd.f32 %v221, %v160
    %v227 = vadd.f32 %v223, %v167
    %v232 = vcombine.low %v129, %v130
    %v233 = vcombine.low %v131, %v132
    %v236 = vmul.f32 %v81, %v232
    %v237 = vmul.f32 %v82, %v233
    %v240 = vcombine.high %v236, %v236
    %v241 = vcombine.high %v237, %v237
    %v244 = vsel %vm139, %v236, 0.0
    %v245 = vrot.slane %v244, 4
    %v246 = vadd.f32 %v244, %v245
    %v247 = vrot.slane %v246, 2
    %v248 = vadd.f32 %v246, %v247
    %v249 = vrot.slane %v248, 1
    %v250 = vadd.f32 %v248, %v249
    %v251 = vsel %vm139, %v240, 0.0
    %v252 = vrot.slane %v251, 4
    %v253 = vadd.f32 %v251, %v252
    %v254 = vrot.slane %v253, 2
    %v255 = vadd.f32 %v253, %v254
    %v256 = vrot.slane %v255, 1
    %v257 = vadd.f32 %v255, %v256
    %v258 = vsel %vm139, %v237, 0.0
    %v259 = vrot.slane %v258, 4
    %v260 = vadd.f32 %v258, %v259
    %v261 = vrot.slane %v260, 2
    %v262 = vadd.f32 %v260, %v261
    %v263 = vrot.slane %v262, 1
    %v264 = vadd.f32 %v262, %v263
    %v265 = vsel %vm139, %v241, 0.0
    %v266 = vrot.slane %v265, 4
    %v267 = vadd.f32 %v265, %v266
    %v268 = vrot.slane %v267, 2
    %v269 = vadd.f32 %v267, %v268
    %v270 = vrot.slane %v269, 1
    %v271 = vadd.f32 %v269, %v270
    %v272 = vsub.f32 %v224, %v250
    %v273 = vsub.f32 %v225, %v257
    %v274 = vsub.f32 %v226, %v264
    %v275 = vsub.f32 %v227, %v271
    %v276 = vld [vmem:[%s2] sm:$0xf]
    %278 = vset.pattern.permute.xlu0 0
    %279 = vperm.xlu0 %278, %v276
    %v280 = vpop.permute.xlu0 %279
    %v282 = vmul.f32 %v280, %v129
    %v283 = vmul.f32 %v280, %v130
    %v284 = vmul.f32 %v280, %v131
    %v285 = vmul.f32 %v280, %v132
    %v286 = vsel %vm139, %v282, 0.0
    %v287 = vrot.slane %v286, 4
    %v288 = vadd.f32 %v286, %v287
    %v289 = vrot.slane %v288, 2
    %v290 = vadd.f32 %v288, %v289
    %v291 = vrot.slane %v290, 1
    %v292 = vadd.f32 %v290, %v291
    %v293 = vsel %vm139, %v283, 0.0
    %v294 = vrot.slane %v293, 4
    %v295 = vadd.f32 %v293, %v294
    %v296 = vrot.slane %v295, 2
    %v297 = vadd.f32 %v295, %v296
    %v298 = vrot.slane %v297, 1
    %v299 = vadd.f32 %v297, %v298
    %v300 = vsel %vm139, %v284, 0.0
    %v301 = vrot.slane %v300, 4
    %v302 = vadd.f32 %v300, %v301
    %v303 = vrot.slane %v302, 2
    %v304 = vadd.f32 %v302, %v303
    %v305 = vrot.slane %v304, 1
    %v306 = vadd.f32 %v304, %v305
    %v307 = vsel %vm139, %v285, 0.0
    %v308 = vrot.slane %v307, 4
    %v309 = vadd.f32 %v307, %v308
    %v310 = vrot.slane %v309, 2
    %v311 = vadd.f32 %v309, %v310
    %v312 = vrot.slane %v311, 1
    %v313 = vadd.f32 %v311, %v312
    %v314 = vmul.f32 %v272, %v292
    %v315 = vmul.f32 %v273, %v299
    %v316 = vmul.f32 %v274, %v306
    %v317 = vmul.f32 %v275, %v313
    %v318 = vsel %vm119, %v314, 0.0
    %v319 = vsel %vm120, %v315, 0.0
    %v320 = vsel %vm119, %v316, 0.0
    %v321 = vsel %vm120, %v317, 0.0
    %v322 = vld [vmem:[#allocation5] sm:$0x1]
    %vm323 = vcmask 1040384
    %v324 = vsel %vm323, %v318, 0.0
    %v325 = vsel %vm323, %v319, 0.0
    %v326 = vadd.f32 %v324, %v325
    %v327 = vsel %vm323, %v320, 0.0
    %v328 = vadd.f32 %v326, %v327
    %v329 = vsel %vm323, %v321, 0.0
    %v330 = vadd.f32 %v328, %v329
    %331 = vadd.xlane.f32.xlu0 %v330
    %v332 = vpop.xlane.xlu0 %331
    %v333 = vrot.slane %v332, 4
    %v334 = vadd.f32 %v332, %v333
    %v335 = vrot.slane %v334, 2
    %v336 = vadd.f32 %v334, %v335
    %v337 = vrot.slane %v336, 1
    %v338 = vadd.f32 %v336, %v337
    %s339 = vtos %v338
    %v340 = vstv %s339
    %v341 = vadd.f32 %v322, %v340
    %vm342 = vcmask 0
    %343 = vst.msk [vmem:[#allocation5] sm:$0x1] %vm342, %v341
    %vm344 = vcmp.eq.f32.partialorder %v81, %v172
    %vm345 = vcmp.eq.f32.partialorder %v82, %v173
    %v347 = vunpack.c.l.s4 839922192
    %v348 = vunpack.c.0.s8 %v347
    %v349 = vlaneseq
    %v350 = vshrl.u32 %v349, 7
    %v351 = vsub.s32 %v348, %v350
    %v352 = vrot.slane %v96, %v351
    %v353 = vsel %vm344, %v352, 4
    %v354 = vsel %vm345, %v352, 4
    %v355 = vcombine.high %v353, %v353
    %v356 = vcombine.high %v354, %v354
    %v357 = vsel %vm139, %v353, 2147483647
    %v358 = vrot.slane %v357, 4
    %vm359 = vcmp.lt.s32.totalorder %v357, %v358
    %v360 = vsel %vm359, %v357, %v358
    %v361 = vrot.slane %v360, 2
    %vm362 = vcmp.lt.s32.totalorder %v360, %v361
    %v363 = vsel %vm362, %v360, %v361
    %v364 = vrot.slane %v363, 1
    %vm365 = vcmp.lt.s32.totalorder %v363, %v364
    %v366 = vsel %vm365, %v363, %v364
    %v367 = vsel %vm139, %v355, 2147483647
    %v368 = vrot.slane %v367, 4
    %vm369 = vcmp.lt.s32.totalorder %v367, %v368
    %v370 = vsel %vm369, %v367, %v368
    %v371 = vrot.slane %v370, 2
    %vm372 = vcmp.lt.s32.totalorder %v370, %v371
    %v373 = vsel %vm372, %v370, %v371
    %v374 = vrot.slane %v373, 1
    %vm375 = vcmp.lt.s32.totalorder %v373, %v374
    %v376 = vsel %vm375, %v373, %v374
    %v377 = vsel %vm139, %v354, 2147483647
    %v378 = vrot.slane %v377, 4
    %vm379 = vcmp.lt.s32.totalorder %v377, %v378
    %v380 = vsel %vm379, %v377, %v378
    %v381 = vrot.slane %v380, 2
    %vm382 = vcmp.lt.s32.totalorder %v380, %v381
    %v383 = vsel %vm382, %v380, %v381
    %v384 = vrot.slane %v383, 1
    %vm385 = vcmp.lt.s32.totalorder %v383, %v384
    %v386 = vsel %vm385, %v383, %v384
    %v387 = vsel %vm139, %v356, 2147483647
    %v388 = vrot.slane %v387, 4
    %vm389 = vcmp.lt.s32.totalorder %v387, %v388
    %v390 = vsel %vm389, %v387, %v388
    %v391 = vrot.slane %v390, 2
    %vm392 = vcmp.lt.s32.totalorder %v390, %v391
    %v393 = vsel %vm392, %v390, %v391
    %v394 = vrot.slane %v393, 1
    %vm395 = vcmp.lt.s32.totalorder %v393, %v394
    %v396 = vsel %vm395, %v393, %v394
    %vm397 = vcmp.eq.s32.totalorder %v96, %v366
    %vm398 = vcmp.eq.s32.totalorder %v96, %v376
    %vm399 = vcmp.eq.s32.totalorder %v96, %v386
    %vm400 = vcmp.eq.s32.totalorder %v96, %v396
    %vm401 = vmand %vm397, %vm119
    %vm402 = vmand %vm398, %vm120
    %vm403 = vmand %vm399, %vm119
    %vm404 = vmand %vm400, %vm120
    %v405 = vsel %vm401, 1, 0
    %v406 = vsel %vm402, 1, 0
    %v407 = vsel %vm403, 1, 0
    %v408 = vsel %vm404, 1, 0
    %v409 = vcvt.s32.f32 %v405
    %v410 = vcvt.s32.f32 %v406
    %v411 = vcvt.s32.f32 %v407
    %v412 = vcvt.s32.f32 %v408
    %v413 = vld [vmem:[#allocation6] sm:$0x3]
    %v414 = vmul.f32 %v409, %v129
    %v415 = vmul.f32 %v410, %v130
    %v416 = vmul.f32 %v411, %v131
    %v417 = vmul.f32 %v412, %v132
    %v418 = vsel %vm139, %v414, 0.0
    %v419 = vsel %vm139, %v415, 0.0
    %v420 = vadd.f32 %v418, %v419
    %421 = vadd.xlane.f32.xlu0 %v420
    %v422 = vpop.xlane.xlu0 %421
    %v423 = vsel %vm139, %v416, 0.0
    %v424 = vsel %vm139, %v417, 0.0
    %v425 = vadd.f32 %v423, %v424
    %426 = vadd.xlane.f32.xlu0 %v425
    %v427 = vpop.xlane.xlu0 %426
    %v430 = vlaneseq
    %v431 = vshrl.u32 %v430, 7
    %v432 = vsub.s32 %v88, %v431
    %v433 = vrot.slane %v422, %v432
    %v434 = vlaneseq
    %v435 = vshrl.u32 %v434, 7
    %v436 = vsub.s32 %v88, %v435
    %v437 = vrot.slane %v427, %v436
    %vm438 = vcmask 1041409
    %v439 = vsel %vm438, %v437, %v433
    %v441 = vadd.f32 %v413, %v439
    %vm442 = vcmask 25600
    %443 = vst.msk [vmem:[#allocation6] sm:$0x3] %vm442, %v441
    %v444 = vld [vmem:[#allocation8] sm:$0x3]
    %v445 = vadd.f32 %v409, %v129
    %v446 = vadd.f32 %v410, %v130
    %v447 = vadd.f32 %v411, %v131
    %v448 = vadd.f32 %v412, %v132
    %v449 = vsel %vm139, %v445, 0.0
    %v450 = vsel %vm139, %v446, 0.0
    %v451 = vadd.f32 %v449, %v450
    %452 = vadd.xlane.f32.xlu0 %v451
    %v453 = vpop.xlane.xlu0 %452
    %v454 = vsel %vm139, %v447, 0.0
    %v455 = vsel %vm139, %v448, 0.0
    %v456 = vadd.f32 %v454, %v455
    %457 = vadd.xlane.f32.xlu0 %v456
    %v458 = vpop.xlane.xlu0 %457
    %v461 = vlaneseq
    %v462 = vshrl.u32 %v461, 7
    %v463 = vsub.s32 %v88, %v462
    %v464 = vrot.slane %v453, %v463
    %v465 = vlaneseq
    %v466 = vshrl.u32 %v465, 7
    %v467 = vsub.s32 %v88, %v466
    %v468 = vrot.slane %v458, %v467
    %v469 = vsel %vm438, %v468, %v464
    %v471 = vadd.f32 %v444, %v469
    %472 = vst.msk [vmem:[#allocation8] sm:$0x3] %vm442, %v471
    // Predicated region
    $region22: #{tpu_custom_call.1} parent=1 // pred_check
      _
    $region23: #{tpu_custom_call.1} parent=1 // pred_check_branch
      %474 = sbr.rel (0) target = $region25
    $region24: #{tpu_custom_call.1} parent=1 // pred_region
      %s476 = ssub.s32 16, 16
      %477 = vsyncadd [#allocation4], %s476
      %s479 = sshll.u32 [#allocation5], 4
      %s480 = int_to_ptr.vmem [resolvable:$true] %s479
      %482 = dma.vmem_to_hbm [thread:$0]  %s480, 16, %s3, [#allocation4]
    $region25: #{tpu_custom_call.1} parent=1 // pred_fallthru
      _
    // Predicated region
    $region26: #{tpu_custom_call.1} parent=1 // pred_check
      _
    $region27: #{tpu_custom_call.1} parent=1 // pred_check_branch
      %484 = sbr.rel (0) target = $region29
    $region28: #{tpu_custom_call.1} parent=1 // pred_region
      %s486 = ssub.s32 32, 32
      %487 = vsyncadd [#allocation7], %s486
      %s489 = sshll.u32 [#allocation6], 4
      %s490 = int_to_ptr.vmem [resolvable:$true] %s489
      %492 = dma.vmem_to_hbm [thread:$0]  %s490, 32, %s4, [#allocation7]
    $region29: #{tpu_custom_call.1} parent=1 // pred_fallthru
      _
    // Predicated region
    $region30: #{tpu_custom_call.1} parent=1 // pred_check
      _
    $region31: #{tpu_custom_call.1} parent=1 // pred_check_branch
      %494 = sbr.rel (0) target = $region33
    $region32: #{tpu_custom_call.1} parent=1 // pred_region
      %s496 = ssub.s32 32, 32
      %497 = vsyncadd [#allocation7], %s496
      %s499 = sshll.u32 [#allocation8], 4
      %s500 = int_to_ptr.vmem [resolvable:$true] %s499
      %502 = dma.vmem_to_hbm [thread:$0]  %s500, 32, %s5, [#allocation7]
    $region33: #{tpu_custom_call.1} parent=1 // pred_fallthru
      _
    // Predicated region
    $region34: #{tpu_custom_call.1} parent=1 // pred_check
      _
    $region35: #{tpu_custom_call.1} parent=1 // pred_check_branch
      %504 = sbr.rel (0) target = $region37
    $region36: #{tpu_custom_call.1} parent=1 // pred_region
      %505 = dma.done [#allocation4], 16
    $region37: #{tpu_custom_call.1} parent=1 // pred_fallthru
      _
    // Predicated region
    $region38: #{tpu_custom_call.1} parent=1 // pred_check
      _
    $region39: #{tpu_custom_call.1} parent=1 // pred_check_branch
      %507 = sbr.rel (0) target = $region41
    $region40: #{tpu_custom_call.1} parent=1 // pred_region
      %508 = dma.done [#allocation7], 32
    $region41: #{tpu_custom_call.1} parent=1 // pred_fallthru
      _
    // Predicated region
    $region42: #{tpu_custom_call.1} parent=1 // pred_check
      _
    $region43: #{tpu_custom_call.1} parent=1 // pred_check_branch
      %510 = sbr.rel (0) target = $region45
    $region44: #{tpu_custom_call.1} parent=1 // pred_region
      %511 = dma.done [#allocation7], 32
    $region45: #{tpu_custom_call.1} parent=1 // pred_fallthru
      _
    %512 = vsyncpa [#allocation3], 1
    %513 = vsyncpa [#allocation4], 1
    %514 = vsyncpa [#allocation7], 1

</llo_original>
